<compile_context>
chip_gen: v6e
topology: v6e:2x2x1
jax: 0.10.0
libtpu: 0.0.40
codegen_flags: <defaults>
</compile_context>

<pallas_src>
import functools

import jax
import jax.numpy as jnp
from jax.experimental import pallas as pl
from jax.experimental.pallas import tpu as pltpu


def _round_up(x, m):
    return (x + m - 1) // m * m


def _fused_kernel_embed(x_ref, w_ref, b_ref, e_ref, o_ref, *, layer_num, matmul_dtype):
    # x_ref: (tn, Cp)  w_ref: (L, Cp, Cp)  b_ref: (L, 1, Cp)  e_ref: (L, 1, Cp)
    a = x_ref[...].astype(jnp.float32)
    for li in range(layer_num):                       # statically unrolled layer loop
        lhs = a if matmul_dtype is None else a.astype(matmul_dtype)
        h = jnp.dot(lhs, w_ref[li], preferred_element_type=jnp.float32)
        h = jnp.maximum(h + b_ref[li], 0.0)           # bias stored f32
        a = h + e_ref[li]                             # embed stored f32
    o_ref[...] = a.astype(o_ref.dtype)


def _fused_kernel_no_embed(x_ref, w_ref, b_ref, o_ref, *, layer_num, matmul_dtype):
    a = x_ref[...].astype(jnp.float32)
    for li in range(layer_num):
        lhs = a if matmul_dtype is None else a.astype(matmul_dtype)
        h = jnp.dot(lhs, w_ref[li], preferred_element_type=jnp.float32)
        a = jnp.maximum(h + b_ref[li], 0.0)
    o_ref[...] = a.astype(o_ref.dtype)


def mlp_w_skip_forward(x, params, embed=None, *, tile_rows=1024,
                       matmul_dtype=jnp.bfloat16):
    """
    x:      [B, N, in_ch]
    params: list of (W [Cin, Cout], b [Cout]) per layer (W is torch weight.T)
    embed:  optional [B, layer_num, Cout]
    matmul_dtype: dtype used for the MXU operands (weights stored in this dtype
                  in HBM); None keeps everything in x.dtype (exact f32 path).
    """
    B, N, in_ch = x.shape
    L = len(params)
    inter_ch = params[0][0].shape[1]
    dtype = x.dtype
    itemsize = jnp.dtype(dtype).itemsize
    param_dtype = dtype if matmul_dtype is None else jnp.dtype(matmul_dtype)
    w_itemsize = jnp.dtype(param_dtype).itemsize

    # One shared padded channel width so all layer weights stack into [L, Cp, Cp].
    # 128-multiple keeps output stores lane-dense; odd multiples of 128 (>128)
    # are bumped to a 256 multiple to fully feed the 256-wide v6e/v7x MXU.
    Cp = _round_up(max(in_ch, inter_ch), 128)
    if Cp > 128 and Cp % 256 != 0:
        Cp = _round_up(Cp, 256)

    # Tile the point dimension (8-aligned rows; 1024 amortizes grid-step overhead).
    tn = min(_round_up(N, 8), _round_up(tile_rows, 8))
    Np = _round_up(N, tn)
    # NOTE: for best v7x utilization B * (Np // tn) should be >= 2 (both TCs busy).

    # Pad and stack parameters (zero padding keeps padded channels exactly 0
    # through matmul / bias / relu / embed, so results are unchanged).
    w_list, b_list = [], []
    for (w, b) in params:
        cin, cout = w.shape
        w_list.append(jnp.pad(w.astype(param_dtype), ((0, Cp - cin), (0, Cp - cout))))
        b_list.append(jnp.pad(b.reshape(1, -1).astype(jnp.float32),
                              ((0, 0), (0, Cp - cout))))
    w_stack = jnp.stack(w_list)                       # [L, Cp, Cp]  (bf16 by default)
    b_stack = jnp.stack(b_list)                       # [L, 1, Cp]   (f32)

    # Conditional padding: no extra XLA copy kernels when already aligned.
    if Np != N or Cp != in_ch:
        xp = jnp.pad(x, ((0, 0), (0, Np - N), (0, Cp - in_ch)))   # [B, Np, Cp]
    else:
        xp = x

    grid = (B, Np // tn)

    x_spec = pl.BlockSpec((None, tn, Cp), lambda bi, ni: (bi, ni, 0))
    # Constant index maps -> weight / bias stacks are VMEM-resident across the grid.
    w_spec = pl.BlockSpec((L, Cp, Cp), lambda bi, ni: (0, 0, 0))
    b_spec = pl.BlockSpec((L, 1, Cp), lambda bi, ni: (0, 0, 0))
    o_spec = pl.BlockSpec((None, tn, Cp), lambda bi, ni: (bi, ni, 0))

    in_specs = [x_spec, w_spec, b_spec]
    inputs = [xp, w_stack, b_stack]
    embed_bytes = 0

    if embed is not None:
        # [B, L, Cout] -> [B, L, 1, Cp] f32; all L rows for the current batch are
        # fetched as one block (re-fetched only when bi changes).
        ep = jnp.pad(embed.astype(jnp.float32), ((0, 0), (0, 0), (0, Cp - inter_ch)))
        ep = ep.reshape(B, L, 1, Cp)
        e_spec = pl.BlockSpec((None, L, 1, Cp), lambda bi, ni: (bi, 0, 0, 0))
        in_specs.append(e_spec)
        inputs.append(ep)
        embed_bytes = ep.size * 4
        kernel = functools.partial(_fused_kernel_embed,
                                   layer_num=L, matmul_dtype=matmul_dtype)
    else:
        kernel = functools.partial(_fused_kernel_no_embed,
                                   layer_num=L, matmul_dtype=matmul_dtype)

    # VMEM budget (all buffers counted double-buffered for safety) + 2x slack,
    # capped at 48 MiB so v7x (64 MiB physical) keeps internal-scratch headroom.
    vmem_bytes = (
        tn * Cp * 4                        # f32 running activation
        + 2 * tn * Cp * itemsize           # x tile, double-buffered
        + 2 * tn * Cp * itemsize           # out tile, double-buffered
        + 2 * L * Cp * Cp * w_itemsize     # resident weight stack
        + 2 * L * Cp * 4                   # bias rows
        + 2 * L * Cp * 4                   # embed rows
    )
    vmem_limit = int(min(max(2 * vmem_bytes, 32 << 20), 48 << 20))

    flops = 2 * B * Np * Cp * Cp * L
    bytes_accessed = int(
        xp.size * itemsize + w_stack.size * w_itemsize + b_stack.size * 4
        + B * Np * Cp * itemsize + embed_bytes
    )

    out = pl.pallas_call(
        kernel,
        out_shape=jax.ShapeDtypeStruct((B, Np, Cp), dtype),
        grid_spec=pltpu.PrefetchScalarGridSpec(
            num_scalar_prefetch=0,
            grid=grid,
            in_specs=in_specs,
            out_specs=o_spec,
        ),
        compiler_params=pltpu.CompilerParams(
            dimension_semantics=("parallel", "parallel"),
            vmem_limit_bytes=vmem_limit,
        ),
        cost_estimate=pl.CostEstimate(
            flops=flops, transcendentals=0, bytes_accessed=bytes_accessed),
    )(*inputs)

    if Np != N or Cp != inter_ch:
        out = out[:, :N, :inter_ch]
    return out


def init_params(key, in_ch, intermediate_ch, layer_num):
    params = []
    for layer_idx in range(layer_num):
        cin = in_ch if layer_idx == 0 else intermediate_ch
        cout = intermediate_ch
        key, kw, kb = jax.random.split(key, 3)
        bound = 1.0 / (cin ** 0.5)          # torch nn.Linear default init range
        w = jax.random.uniform(kw, (cin, cout), jnp.float32, -bound, bound)
        b = jax.random.uniform(kb, (cout,), jnp.float32, -bound, bound)
        params.append((w, b))
    return params


def reference_forward(x, params, embed=None):
    for layer_idx, (w, b) in enumerate(params):
        x = jnp.maximum(jnp.dot(x, w) + b, 0.0)
        if embed is not None:
            x = x + embed[:, layer_idx][:, None, :]
    return x


if __name__ == "__main__":
    B, N = 2, 8
    in_ch, intermediate_ch, layer_num = 16, 32, 4

    key = jax.random.PRNGKey(0)
    key, kx, ke, kp = jax.random.split(key, 4)
    x = jax.random.normal(kx, (B, N, in_ch), jnp.float32)
    embed = jax.random.normal(ke, (B, layer_num, intermediate_ch), jnp.float32)
    params = init_params(kp, in_ch, intermediate_ch, layer_num)

    ref = reference_forward(x, params, embed)
    ref_ne = reference_forward(x, params, None)

    # Production path: bf16 MXU operands, f32 accumulation (looser tolerance).
    out = jax.block_until_ready(mlp_w_skip_forward(x, params, embed))
    assert out.shape == (B, N, intermediate_ch)
    assert jnp.allclose(out, ref, atol=5e-2, rtol=5e-2)

    out_ne = jax.block_until_ready(mlp_w_skip_forward(x, params, None))
    assert jnp.allclose(out_ne, ref_ne, atol=5e-2, rtol=5e-2)

    # Exact f32 path: tight tolerance against the pure-JAX reference.
    out_f32 = jax.block_until_ready(mlp_w_skip_forward(x, params, embed,
                                                       matmul_dtype=None))
    assert jnp.allclose(out_f32, ref, atol=1e-5, rtol=1e-5)

    out_f32_ne = jax.block_until_ready(mlp_w_skip_forward(x, params, None,
                                                          matmul_dtype=None))
    assert jnp.allclose(out_f32_ne, ref_ne, atol=1e-5, rtol=1e-5)

    print("KERNEL_OK")
</pallas_src>

<mosaic_0001>
module attributes {stable_mosaic.version = 11 : i64} {
  func.func @_fused_kernel_embed(%arg0: i32, %arg1: i32, %arg2: memref<1x8x128xf32, #tpu.memory_space<vmem>>, %arg3: memref<4x128x128xbf16, #tpu.memory_space<vmem>>, %arg4: memref<4x1x128xf32, #tpu.memory_space<vmem>>, %arg5: memref<1x4x1x128xf32, #tpu.memory_space<vmem>>, %arg6: memref<1x8x128xf32, #tpu.memory_space<vmem>>) attributes {dimension_semantics = [#tpu.dimension_semantics<parallel>, #tpu.dimension_semantics<parallel>], iteration_bounds = array<i64: 2, 1>, scalar_prefetch = 0 : i64, scratch_operands = 0 : i64, tpu.core_type = #tpu.core_type<tc>, window_params = [{transform_indices = @transform_0, window_bounds = array<i64: 1, 8, 128>}, {pipeline_mode = #tpu.pipeline_mode<synchronous>, transform_indices = @transform_1, window_bounds = array<i64: 4, 128, 128>}, {pipeline_mode = #tpu.pipeline_mode<synchronous>, transform_indices = @transform_2, window_bounds = array<i64: 4, 1, 128>}, {transform_indices = @transform_3, window_bounds = array<i64: 1, 4, 1, 128>}, {transform_indices = @transform_4, window_bounds = array<i64: 1, 8, 128>}]} {
    %c0 = arith.constant 0 : index
    %c0_0 = arith.constant 0 : index
    %c0_1 = arith.constant 0 : index
    %0 = vector.load %arg2[%c0, %c0_0, %c0_1] : memref<1x8x128xf32, #tpu.memory_space<vmem>>, vector<1x8x128xf32>
    %1 = vector.shape_cast %0 : vector<1x8x128xf32> to vector<8x128xf32>
    %2 = arith.truncf %1 : vector<8x128xf32> to vector<8x128xbf16>
    %c0_2 = arith.constant 0 : index
    %c0_3 = arith.constant 0 : index
    %c0_4 = arith.constant 0 : index
    %3 = vector.load %arg3[%c0_2, %c0_3, %c0_4] : memref<4x128x128xbf16, #tpu.memory_space<vmem>>, vector<1x128x128xbf16>
    %4 = vector.shape_cast %3 : vector<1x128x128xbf16> to vector<128x128xbf16>
    %cst = arith.constant dense<0.000000e+00> : vector<8x128xf32>
    %5 = tpu.matmul %2, %4, %cst {dimension_numbers = #tpu.dot_dimension_numbers<[1], [0], [0], [1], [0, 0, 1, 1], [], []>} : vector<8x128xbf16>, vector<128x128xbf16>, vector<8x128xf32> -> vector<8x128xf32>
    %c0_5 = arith.constant 0 : index
    %c0_6 = arith.constant 0 : index
    %c0_7 = arith.constant 0 : index
    %6 = vector.load %arg4[%c0_5, %c0_6, %c0_7] : memref<4x1x128xf32, #tpu.memory_space<vmem>>, vector<1x1x128xf32>
    %7 = vector.shape_cast %6 : vector<1x1x128xf32> to vector<1x128xf32>
    %8 = vector.broadcast %7 : vector<1x128xf32> to vector<8x128xf32>
    %9 = arith.addf %5, %8 : vector<8x128xf32>
    %cst_8 = arith.constant 0.000000e+00 : f32
    %10 = vector.broadcast %cst_8 : f32 to vector<8x128xf32>
    %11 = arith.maximumf %9, %10 : vector<8x128xf32>
    %c0_9 = arith.constant 0 : index
    %c0_10 = arith.constant 0 : index
    %c0_11 = arith.constant 0 : index
    %c0_12 = arith.constant 0 : index
    %12 = vector.load %arg5[%c0_9, %c0_10, %c0_11, %c0_12] : memref<1x4x1x128xf32, #tpu.memory_space<vmem>>, vector<1x1x1x128xf32>
    %13 = vector.shape_cast %12 : vector<1x1x1x128xf32> to vector<1x128xf32>
    %14 = vector.broadcast %13 : vector<1x128xf32> to vector<8x128xf32>
    %15 = arith.addf %11, %14 : vector<8x128xf32>
    %16 = arith.truncf %15 : vector<8x128xf32> to vector<8x128xbf16>
    %c1 = arith.constant 1 : index
    %c0_13 = arith.constant 0 : index
    %c0_14 = arith.constant 0 : index
    %17 = vector.load %arg3[%c1, %c0_13, %c0_14] : memref<4x128x128xbf16, #tpu.memory_space<vmem>>, vector<1x128x128xbf16>
    %18 = vector.shape_cast %17 : vector<1x128x128xbf16> to vector<128x128xbf16>
    %cst_15 = arith.constant dense<0.000000e+00> : vector<8x128xf32>
    %19 = tpu.matmul %16, %18, %cst_15 {dimension_numbers = #tpu.dot_dimension_numbers<[1], [0], [0], [1], [0, 0, 1, 1], [], []>} : vector<8x128xbf16>, vector<128x128xbf16>, vector<8x128xf32> -> vector<8x128xf32>
    %c1_16 = arith.constant 1 : index
    %c0_17 = arith.constant 0 : index
    %c0_18 = arith.constant 0 : index
    %20 = vector.load %arg4[%c1_16, %c0_17, %c0_18] : memref<4x1x128xf32, #tpu.memory_space<vmem>>, vector<1x1x128xf32>
    %21 = vector.shape_cast %20 : vector<1x1x128xf32> to vector<1x128xf32>
    %22 = vector.broadcast %21 : vector<1x128xf32> to vector<8x128xf32>
    %23 = arith.addf %19, %22 : vector<8x128xf32>
    %cst_19 = arith.constant 0.000000e+00 : f32
    %24 = vector.broadcast %cst_19 : f32 to vector<8x128xf32>
    %25 = arith.maximumf %23, %24 : vector<8x128xf32>
    %c0_20 = arith.constant 0 : index
    %c1_21 = arith.constant 1 : index
    %c0_22 = arith.constant 0 : index
    %c0_23 = arith.constant 0 : index
    %26 = vector.load %arg5[%c0_20, %c1_21, %c0_22, %c0_23] : memref<1x4x1x128xf32, #tpu.memory_space<vmem>>, vector<1x1x1x128xf32>
    %27 = vector.shape_cast %26 : vector<1x1x1x128xf32> to vector<1x128xf32>
    %28 = vector.broadcast %27 : vector<1x128xf32> to vector<8x128xf32>
    %29 = arith.addf %25, %28 : vector<8x128xf32>
    %30 = arith.truncf %29 : vector<8x128xf32> to vector<8x128xbf16>
    %c2 = arith.constant 2 : index
    %c0_24 = arith.constant 0 : index
    %c0_25 = arith.constant 0 : index
    %31 = vector.load %arg3[%c2, %c0_24, %c0_25] : memref<4x128x128xbf16, #tpu.memory_space<vmem>>, vector<1x128x128xbf16>
    %32 = vector.shape_cast %31 : vector<1x128x128xbf16> to vector<128x128xbf16>
    %cst_26 = arith.constant dense<0.000000e+00> : vector<8x128xf32>
    %33 = tpu.matmul %30, %32, %cst_26 {dimension_numbers = #tpu.dot_dimension_numbers<[1], [0], [0], [1], [0, 0, 1, 1], [], []>} : vector<8x128xbf16>, vector<128x128xbf16>, vector<8x128xf32> -> vector<8x128xf32>
    %c2_27 = arith.constant 2 : index
    %c0_28 = arith.constant 0 : index
    %c0_29 = arith.constant 0 : index
    %34 = vector.load %arg4[%c2_27, %c0_28, %c0_29] : memref<4x1x128xf32, #tpu.memory_space<vmem>>, vector<1x1x128xf32>
    %35 = vector.shape_cast %34 : vector<1x1x128xf32> to vector<1x128xf32>
    %36 = vector.broadcast %35 : vector<1x128xf32> to vector<8x128xf32>
    %37 = arith.addf %33, %36 : vector<8x128xf32>
    %cst_30 = arith.constant 0.000000e+00 : f32
    %38 = vector.broadcast %cst_30 : f32 to vector<8x128xf32>
    %39 = arith.maximumf %37, %38 : vector<8x128xf32>
    %c0_31 = arith.constant 0 : index
    %c2_32 = arith.constant 2 : index
    %c0_33 = arith.constant 0 : index
    %c0_34 = arith.constant 0 : index
    %40 = vector.load %arg5[%c0_31, %c2_32, %c0_33, %c0_34] : memref<1x4x1x128xf32, #tpu.memory_space<vmem>>, vector<1x1x1x128xf32>
    %41 = vector.shape_cast %40 : vector<1x1x1x128xf32> to vector<1x128xf32>
    %42 = vector.broadcast %41 : vector<1x128xf32> to vector<8x128xf32>
    %43 = arith.addf %39, %42 : vector<8x128xf32>
    %44 = arith.truncf %43 : vector<8x128xf32> to vector<8x128xbf16>
    %c3 = arith.constant 3 : index
    %c0_35 = arith.constant 0 : index
    %c0_36 = arith.constant 0 : index
    %45 = vector.load %arg3[%c3, %c0_35, %c0_36] : memref<4x128x128xbf16, #tpu.memory_space<vmem>>, vector<1x128x128xbf16>
    %46 = vector.shape_cast %45 : vector<1x128x128xbf16> to vector<128x128xbf16>
    %cst_37 = arith.constant dense<0.000000e+00> : vector<8x128xf32>
    %47 = tpu.matmul %44, %46, %cst_37 {dimension_numbers = #tpu.dot_dimension_numbers<[1], [0], [0], [1], [0, 0, 1, 1], [], []>} : vector<8x128xbf16>, vector<128x128xbf16>, vector<8x128xf32> -> vector<8x128xf32>
    %c3_38 = arith.constant 3 : index
    %c0_39 = arith.constant 0 : index
    %c0_40 = arith.constant 0 : index
    %48 = vector.load %arg4[%c3_38, %c0_39, %c0_40] : memref<4x1x128xf32, #tpu.memory_space<vmem>>, vector<1x1x128xf32>
    %49 = vector.shape_cast %48 : vector<1x1x128xf32> to vector<1x128xf32>
    %50 = vector.broadcast %49 : vector<1x128xf32> to vector<8x128xf32>
    %51 = arith.addf %47, %50 : vector<8x128xf32>
    %cst_41 = arith.constant 0.000000e+00 : f32
    %52 = vector.broadcast %cst_41 : f32 to vector<8x128xf32>
    %53 = arith.maximumf %51, %52 : vector<8x128xf32>
    %c0_42 = arith.constant 0 : index
    %c3_43 = arith.constant 3 : index
    %c0_44 = arith.constant 0 : index
    %c0_45 = arith.constant 0 : index
    %54 = vector.load %arg5[%c0_42, %c3_43, %c0_44, %c0_45] : memref<1x4x1x128xf32, #tpu.memory_space<vmem>>, vector<1x1x1x128xf32>
    %55 = vector.shape_cast %54 : vector<1x1x1x128xf32> to vector<1x128xf32>
    %56 = vector.broadcast %55 : vector<1x128xf32> to vector<8x128xf32>
    %57 = arith.addf %53, %56 : vector<8x128xf32>
    %c0_46 = arith.constant 0 : index
    %c0_47 = arith.constant 0 : index
    %c0_48 = arith.constant 0 : index
    %58 = vector.load %arg6[%c0_46, %c0_47, %c0_48] : memref<1x8x128xf32, #tpu.memory_space<vmem>>, vector<1x8x128xf32>
    %59 = vector.shape_cast %58 : vector<1x8x128xf32> to vector<8x128xf32>
    %60 = vector.shape_cast %57 : vector<8x128xf32> to vector<1x8x128xf32>
    tpu.vector_store %arg6[%c0_46, %c0_47, %c0_48], %60 {strides = array<i32>} : memref<1x8x128xf32, #tpu.memory_space<vmem>>, vector<1x8x128xf32>,
    return
  }
  func.func @transform_0(%arg0: i32, %arg1: i32) -> (i32, i32, i32) {
    %c0_i32 = arith.constant 0 : i32
    %c0_i32_0 = arith.constant 0 : i32
    return %arg0, %arg1, %c0_i32 : i32, i32, i32
  }
  func.func @transform_1(%arg0: i32, %arg1: i32) -> (i32, i32, i32) {
    %c0_i32 = arith.constant 0 : i32
    %c0_i32_0 = arith.constant 0 : i32
    %c0_i32_1 = arith.constant 0 : i32
    %c0_i32_2 = arith.constant 0 : i32
    return %c0_i32, %c0_i32_0, %c0_i32_1 : i32, i32, i32
  }
  func.func @transform_2(%arg0: i32, %arg1: i32) -> (i32, i32, i32) {
    %c0_i32 = arith.constant 0 : i32
    %c0_i32_0 = arith.constant 0 : i32
    %c0_i32_1 = arith.constant 0 : i32
    %c0_i32_2 = arith.constant 0 : i32
    return %c0_i32, %c0_i32_0, %c0_i32_1 : i32, i32, i32
  }
  func.func @transform_3(%arg0: i32, %arg1: i32) -> (i32, i32, i32, i32) {
    %c0_i32 = arith.constant 0 : i32
    %c0_i32_0 = arith.constant 0 : i32
    %c0_i32_1 = arith.constant 0 : i32
    %c0_i32_2 = arith.constant 0 : i32
    return %arg0, %c0_i32, %c0_i32_0, %c0_i32_1 : i32, i32, i32, i32
  }
  func.func @transform_4(%arg0: i32, %arg1: i32) -> (i32, i32, i32) {
    %c0_i32 = arith.constant 0 : i32
    %c0_i32_0 = arith.constant 0 : i32
    return %arg0, %arg1, %c0_i32 : i32, i32, i32
  }
}

</mosaic_0001>

<llo_original>
// kernel: tpu_custom_call.1
$region0: #{tpu_custom_call.1}
  #allocation0 [shape = 'u32[]', space=smem, size = 0x4, offset = 0x4, fixed_abs, tag = 'smem constant byte address 0x4 - core index']
  #allocation1 [shape = 'u32[144,128]{1,0:T(1,128)}', space=vmem, size = 0x12000, scoped, tag = 'internal scratch']
  %s0 = inlined_call_operand.hbm [shape: f32[2,8,128], index: 0, kind: input, shape index: {}]
  %s1 = inlined_call_operand.hbm [shape: bf16[4,128,128], index: 1, kind: input, shape index: {}]
  %s2 = inlined_call_operand.hbm [shape: f32[4,1,128], index: 2, kind: input, shape index: {}]
  %s3 = inlined_call_operand.hbm [shape: f32[2,4,1,128], index: 3, kind: input, shape index: {}]
  %s4 = inlined_call_operand.hbm [shape: f32[2,8,128], index: 4, kind: output, shape index: {}]
  %s5 = sld [smem:[#allocation0]]
  $region65: #{tpu_custom_call.1} parent=0
    _
  %s7 = ssub.s32 1, %s5
  %s8 = scalar_select 0, %s7, %s5
  $region1: #{tpu_custom_call.1} parent=0
    #allocation2 [shape = 'u8[8192]{0}', space=vmem, size = 0x2000, scoped, tag = 'input window, operand 0']
    #allocation3 [shape = 's32[2]{0}', space=sflag, size = 0x8, scoped, tag = 'scoped memory for tpu_custom_call.1']
    #allocation4 [shape = 's32[2]{0}', space=sflag, size = 0x8, scoped, tag = 'scoped memory for tpu_custom_call.1']
    #allocation5 [shape = 'u8[131072]{0}', space=vmem, size = 0x20000, scoped, tag = 'input window, operand 1, single buffered']
    #allocation6 [shape = 's32[1]{0}', space=sflag, size = 0x4, scoped, tag = 'scoped memory for tpu_custom_call.1']
    #allocation7 [shape = 'u8[2048]{0}', space=vmem, size = 0x800, scoped, tag = 'input window, operand 2, single buffered']
    #allocation8 [shape = 'u8[4096]{0}', space=vmem, size = 0x1000, scoped, tag = 'input window, operand 3']
    #allocation9 [shape = 's32[2]{0}', space=sflag, size = 0x8, scoped, tag = 'scoped memory for tpu_custom_call.1']
    #allocation10 [shape = 'u8[8192]{0}', space=vmem, size = 0x2000, scoped, tag = 'output window, operand 0']
    %9 = vsyncpa [#allocation3], 0
    %s10 = scalar_lea.sflag [#allocation3], 1
    %11 = vsyncpa %s10, 0
    %12 = vsyncpa [#allocation6], 0
    %13 = vsyncpa [#allocation9], 0
    %s14 = scalar_lea.sflag [#allocation9], 1
    %15 = vsyncpa %s14, 0
    %16 = vsyncpa [#allocation4], 0
    %s17 = scalar_lea.sflag [#allocation4], 1
    %18 = vsyncpa %s17, 0
    loop: start=0, step=1, limit=4
    $region2: #{tpu_custom_call.1} parent=1 // loop_pre_header
      _
    $region3: #{tpu_custom_call.1} parent=1 // loop_header
      %s20 = sphi 0, %s24
      %p21 = scmp.ge.s32.totalorder %s20, 4
      %s27 = sphi 0, %s39
      %s28 = sphi 0, %s35
      %s29 = sphi 0, %s27
      %s30 = sphi 0, %s28
      %s31 = sphi 0, %s29
      %s32 = sphi 0, %s30
      %s44 = sphi 0, %s46
      %s47 = sphi 0, %s44
      %s48 = sphi 0, %s47
      %s64 = sphi 0, %s48
      %s68 = sphi 0, %s68
      %s70 = sphi 0, %s68
      %s71 = sphi 0, %s70
      %s85 = sphi 0, %s71
      %s89 = sphi 0, %s89
      %s91 = sphi 0, %s89
      %s92 = sphi 0, %s91
      %s106 = sphi 0, %s92
      %s112 = sphi 0, %s114
      %s115 = sphi 0, %s112
      %s116 = sphi 0, %s115
      %s132 = sphi 0, %s116
      %s140 = sphi 0, %s142
      %s143 = sphi 0, %s140
      %s144 = sphi 0, %s143
      %s160 = sphi 0, %s144
    $region4: #{tpu_custom_call.1} parent=1 // loop_header_branch
      %23 = sbr.rel (%p21) target = $region8
    $region5: #{tpu_custom_call.1} parent=1 // loop_body
      %s25 = ssub.s32 %s20, 1
      %s26 = ssub.s32 %s20, 2
      %s33 = sadd.s32 1, %s28
      %p34 = scmp.ge.s32.totalorder %s33, 1
      %s35 = scalar_select %p34, 0, %s33
      %s36 = sadd.s32 1, %s27
      %s37 = scalar_select %p34, %s36, %s27
      %p38 = scmp.ge.s32.totalorder %s37, 2
      %s39 = scalar_select %p38, 0, %s37
      %s40 = ssub.s32 %s27, %s39
      %s41 = ssub.s32 %s28, %s35
      %s42 = sor.u32 %s40, %s41
      %p43 = scmp.eq.s32.totalorder %s42, 0
      %s45 = sadd.s32 %s44, 1
      %s46 = scalar_select %p43, %s44, %s45
      %p49 = pneg %p43
      %p50 = scmp.eq.s32.totalorder %s20, 1
      %p51 = por %p49, %p50
      %p52 = scmp.ne.s32.totalorder %s44, %s47
      %p53 = scmp.eq.s32.totalorder %s20, 0
      %p54 = por %p52, %p53
      %p55 = scmp.ne.s32.totalorder %s44, %s47
      %p56 = scmp.eq.s32.totalorder %s25, 1
      %p57 = por %p55, %p56
      %p58 = scmp.ne.s32.totalorder %s47, %s48
      %p59 = scmp.eq.s32.totalorder %s25, 0
      %p60 = por %p58, %p59
      %p61 = scmp.ne.s32.totalorder %s47, %s48
      %p62 = scmp.eq.s32.totalorder %s26, 1
      %p63 = por %p61, %p62
      %p65 = scmp.ne.s32.totalorder %s48, %s64
      %p66 = scmp.eq.s32.totalorder %s26, 0
      %p67 = por %p65, %p66
      %s69 = sadd.s32 %s68, 1
      %p72 = scmp.eq.s32.totalorder %s20, 1
      %p73 = scmp.ne.s32.totalorder %s68, %s70
      %p74 = scmp.eq.s32.totalorder %s20, 0
      %p75 = por %p73, %p74
      %p76 = scmp.ne.s32.totalorder %s68, %s70
      %p77 = scmp.eq.s32.totalorder %s25, 1
      %p78 = por %p76, %p77
      %p79 = scmp.ne.s32.totalorder %s70, %s71
      %p80 = scmp.eq.s32.totalorder %s25, 0
      %p81 = por %p79, %p80
      %p82 = scmp.ne.s32.totalorder %s70, %s71
      %p83 = scmp.eq.s32.totalorder %s26, 1
      %p84 = por %p82, %p83
      %p86 = scmp.ne.s32.totalorder %s71, %s85
      %p87 = scmp.eq.s32.totalorder %s26, 0
      %p88 = por %p86, %p87
      %s90 = sadd.s32 %s89, 1
      %p93 = scmp.eq.s32.totalorder %s20, 1
      %p94 = scmp.ne.s32.totalorder %s89, %s91
      %p95 = scmp.eq.s32.totalorder %s20, 0
      %p96 = por %p94, %p95
      %p97 = scmp.ne.s32.totalorder %s89, %s91
      %p98 = scmp.eq.s32.totalorder %s25, 1
      %p99 = por %p97, %p98
      %p100 = scmp.ne.s32.totalorder %s91, %s92
      %p101 = scmp.eq.s32.totalorder %s25, 0
      %p102 = por %p100, %p101
      %p103 = scmp.ne.s32.totalorder %s91, %s92
      %p104 = scmp.eq.s32.totalorder %s26, 1
      %p105 = por %p103, %p104
      %p107 = scmp.ne.s32.totalorder %s92, %s106
      %p108 = scmp.eq.s32.totalorder %s26, 0
      %p109 = por %p107, %p108
      %s110 = ssub.s32 %s27, %s39
      %p111 = scmp.eq.s32.totalorder %s110, 0
      %s113 = sadd.s32 %s112, 1
      %s114 = scalar_select %p111, %s112, %s113
      %p117 = pneg %p111
      %p118 = scmp.eq.s32.totalorder %s20, 1
      %p119 = por %p117, %p118
      %p120 = scmp.ne.s32.totalorder %s112, %s115
      %p121 = scmp.eq.s32.totalorder %s20, 0
      %p122 = por %p120, %p121
      %p123 = scmp.ne.s32.totalorder %s112, %s115
      %p124 = scmp.eq.s32.totalorder %s25, 1
      %p125 = por %p123, %p124
      %p126 = scmp.ne.s32.totalorder %s115, %s116
      %p127 = scmp.eq.s32.totalorder %s25, 0
      %p128 = por %p126, %p127
      %p129 = scmp.ne.s32.totalorder %s115, %s116
      %p130 = scmp.eq.s32.totalorder %s26, 1
      %p131 = por %p129, %p130
      %p133 = scmp.ne.s32.totalorder %s116, %s132
      %p134 = scmp.eq.s32.totalorder %s26, 0
      %p135 = por %p133, %p134
      %s136 = ssub.s32 %s27, %s39
      %s137 = ssub.s32 %s28, %s35
      %s138 = sor.u32 %s136, %s137
      %p139 = scmp.eq.s32.totalorder %s138, 0
      %s141 = sadd.s32 %s140, 1
      %s142 = scalar_select %p139, %s140, %s141
      %p145 = pneg %p139
      %p146 = scmp.eq.s32.totalorder %s20, 1
      %p147 = por %p145, %p146
      %p148 = scmp.ne.s32.totalorder %s140, %s143
      %p149 = scmp.eq.s32.totalorder %s20, 0
      %p150 = por %p148, %p149
      %p151 = scmp.ne.s32.totalorder %s140, %s143
      %p152 = scmp.eq.s32.totalorder %s25, 1
      %p153 = por %p151, %p152
      %p154 = scmp.ne.s32.totalorder %s143, %s144
      %p155 = scmp.eq.s32.totalorder %s25, 0
      %p156 = por %p154, %p155
      %p157 = scmp.ne.s32.totalorder %s143, %s144
      %p158 = scmp.eq.s32.totalorder %s26, 1
      %p159 = por %p157, %p158
      %p161 = scmp.ne.s32.totalorder %s144, %s160
      %p162 = scmp.eq.s32.totalorder %s26, 0
      %p163 = por %p161, %p162
      %p164 = scmp.le.s32.totalorder 1, %s20
      %p165 = scmp.lt.s32.totalorder %s20, 3
      %p166 = pnand %p164, %p165
      %p167 = pneg %p166
      // Predicated region
      $region9: #{tpu_custom_call.1} parent=5 // pred_check
        _
      $region10: #{tpu_custom_call.1} parent=5 // pred_check_branch
        %169 = sbr.rel (%p166) target = $region12
      $region11: #{tpu_custom_call.1} parent=5 // pred_region
        %s170 = ssub.s32 %s20, 1
        // Predicated region
        $region13: #{tpu_custom_call.1} parent=11 // pred_check
          %p171 = pneg %p81
        $region14: #{tpu_custom_call.1} parent=11 // pred_check_branch
          %173 = sbr.rel (%p171) target = $region16
        $region15: #{tpu_custom_call.1} parent=11 // pred_region
          %s175 = ssub.s32 4096, 4096
          %176 = vsyncadd [#allocation6], %s175
          %s177 = sshll.u32 [#allocation5], 4
          %s178 = int_to_ptr.vmem [resolvable:$true] %s177
          %183 = dma.hbm_to_vmem [thread:$0]  %s1, 4096, %s178, [#allocation6], 64, 64, 4
        $region16: #{tpu_custom_call.1} parent=11 // pred_fallthru
          _
        // Predicated region
        $region17: #{tpu_custom_call.1} parent=11 // pred_check
          %p184 = pneg %p102
        $region18: #{tpu_custom_call.1} parent=11 // pred_check_branch
          %186 = sbr.rel (%p184) target = $region20
        $region19: #{tpu_custom_call.1} parent=11 // pred_region
          %s188 = ssub.s32 64, 64
          %189 = vsyncadd [#allocation6], %s188
          %s190 = sshll.u32 [#allocation7], 4
          %s191 = int_to_ptr.vmem [resolvable:$true] %s190
          %196 = dma.hbm_to_vmem [thread:$0]  %s2, 64, %s191, [#allocation6], 16, 16, 1
        $region20: #{tpu_custom_call.1} parent=11 // pred_fallthru
          _
      $region12: #{tpu_custom_call.1} parent=5 // pred_fallthru
        _
      %p197 = scmp.lt.s32.totalorder %s20, 2
      // Predicated region
      $region21: #{tpu_custom_call.1} parent=5 // pred_check
        %p198 = pneg %p197
      $region22: #{tpu_custom_call.1} parent=5 // pred_check_branch
        %200 = sbr.rel (%p198) target = $region24
      $region23: #{tpu_custom_call.1} parent=5 // pred_region
        // Predicated region
        $region25: #{tpu_custom_call.1} parent=23 // pred_check
          %p201 = pneg %p54
        $region26: #{tpu_custom_call.1} parent=23 // pred_check_branch
          %203 = sbr.rel (%p201) target = $region28
        $region27: #{tpu_custom_call.1} parent=23 // pred_region
          %s204 = sand.u32 %s44, 1
          %s205 = scalar_lea.sflag [#allocation3], %s204
          %s206 = sand.u32 %s44, 1
          %s207 = smul.addr %s206, 8
          %s208 = scalar_lea.vmem [#allocation2], %s207
          %s210 = ssub.s32 128, 128
          %211 = vsyncadd %s205, %s210
          %s212 = sadd.s32 %s28, %s27
          %s213 = smul.addr %s212, 128
          %s214 = scalar_lea.hbm %s0, %s213
          %s216 = sshll.u32 %s208, 4
          %s217 = int_to_ptr.vmem [resolvable:$true] %s216
          %219 = dma.hbm_to_vmem [thread:$0]  %s214, 128, %s217, %s205
        $region28: #{tpu_custom_call.1} parent=23 // pred_fallthru
          _
        // Predicated region
        $region29: #{tpu_custom_call.1} parent=23 // pred_check
          %p220 = pneg %p122
        $region30: #{tpu_custom_call.1} parent=23 // pred_check_branch
          %222 = sbr.rel (%p220) target = $region32
        $region31: #{tpu_custom_call.1} parent=23 // pred_region
          %s223 = sand.u32 %s112, 1
          %s224 = scalar_lea.sflag [#allocation9], %s223
          %s225 = sand.u32 %s112, 1
          %s226 = smul.addr %s225, 4
          %s227 = scalar_lea.vmem [#allocation8], %s226
          %s229 = ssub.s32 64, 64
          %230 = vsyncadd %s224, %s229
          %s231 = smul.addr %s27, 4
          %s232 = smul.addr %s231, 16
          %s233 = scalar_lea.hbm %s3, %s232
          %s234 = sshll.u32 %s227, 4
          %s235 = int_to_ptr.vmem [resolvable:$true] %s234
          %240 = dma.hbm_to_vmem [thread:$0]  %s233, 64, %s235, %s224, 16, 16, 1
        $region32: #{tpu_custom_call.1} parent=23 // pred_fallthru
          _
      $region24: #{tpu_custom_call.1} parent=5 // pred_fallthru
        _
      %p241 = scmp.le.s32.totalorder 1, %s20
      %p242 = scmp.lt.s32.totalorder %s20, 3
      %p243 = pnand %p241, %p242
      %p244 = pneg %p243
      // Predicated region
      $region33: #{tpu_custom_call.1} parent=5 // pred_check
        _
      $region34: #{tpu_custom_call.1} parent=5 // pred_check_branch
        %246 = sbr.rel (%p243) target = $region36
      $region35: #{tpu_custom_call.1} parent=5 // pred_region
        %s247 = ssub.s32 %s20, 1
        %s248 = sand.u32 %s47, 1
        %s249 = scalar_lea.sflag [#allocation3], %s248
        %s250 = sand.u32 %s47, 1
        %s251 = smul.addr %s250, 8
        %s252 = scalar_lea.vmem [#allocation2], %s251
        // Predicated region
        $region37: #{tpu_custom_call.1} parent=35 // pred_check
          %p253 = pneg %p60
        $region38: #{tpu_custom_call.1} parent=35 // pred_check_branch
          %255 = sbr.rel (%p253) target = $region40
        $region39: #{tpu_custom_call.1} parent=35 // pred_region
          %256 = dma.done %s249, 128
        $region40: #{tpu_custom_call.1} parent=35 // pred_fallthru
          _
        // Predicated region
        $region41: #{tpu_custom_call.1} parent=35 // pred_check
          %p257 = pneg %p81
        $region42: #{tpu_custom_call.1} parent=35 // pred_check_branch
          %259 = sbr.rel (%p257) target = $region44
        $region43: #{tpu_custom_call.1} parent=35 // pred_region
          %260 = dma.done [#allocation6], 4096
        $region44: #{tpu_custom_call.1} parent=35 // pred_fallthru
          _
        // Predicated region
        $region45: #{tpu_custom_call.1} parent=35 // pred_check
          %p261 = pneg %p102
        $region46: #{tpu_custom_call.1} parent=35 // pred_check_branch
          %263 = sbr.rel (%p261) target = $region48
        $region47: #{tpu_custom_call.1} parent=35 // pred_region
          %264 = dma.done [#allocation6], 64
        $region48: #{tpu_custom_call.1} parent=35 // pred_fallthru
          _
        %s265 = sand.u32 %s115, 1
        %s266 = scalar_lea.sflag [#allocation9], %s265
        %s267 = sand.u32 %s115, 1
        %s268 = smul.addr %s267, 4
        %s269 = scalar_lea.vmem [#allocation8], %s268
        // Predicated region
        $region49: #{tpu_custom_call.1} parent=35 // pred_check
          %p270 = pneg %p128
        $region50: #{tpu_custom_call.1} parent=35 // pred_check_branch
          %272 = sbr.rel (%p270) target = $region52
        $region51: #{tpu_custom_call.1} parent=35 // pred_region
          %273 = dma.done %s266, 64
        $region52: #{tpu_custom_call.1} parent=35 // pred_fallthru
          _
        %s274 = sand.u32 %s47, 1
        %s275 = scalar_lea.sflag [#allocation3], %s274
        %s276 = sand.u32 %s47, 1
        %s277 = smul.addr %s276, 8
        %s278 = scalar_lea.vmem [#allocation2], %s277
        %p279 = pneg %p60
        %p280 = pneg %p57
        %p281 = pneg %p81
        %p282 = pneg %p78
        %p283 = pneg %p102
        %p284 = pneg %p99
        %s285 = sand.u32 %s115, 1
        %s286 = scalar_lea.sflag [#allocation9], %s285
        %s287 = sand.u32 %s115, 1
        %s288 = smul.addr %s287, 4
        %s289 = scalar_lea.vmem [#allocation8], %s288
        %p290 = pneg %p128
        %p291 = pneg %p125
        %p292 = pneg %p156
        %p293 = pneg %p153
        %s294 = sand.u32 %s143, 1
        %s295 = scalar_lea.sflag [#allocation4], %s294
        %s296 = sand.u32 %s143, 1
        %s297 = smul.addr %s296, 8
        %s298 = scalar_lea.vmem [#allocation10], %s297
        %v300 = vld [vmem:[%s252] sm:$0xff]
        %v301 = vpack.c.bf16 %v300, %v300
        %v302 = vld [vmem:[#allocation5] sm:$0xf]
        %v303 = vld [vmem:[#allocation5 + $0x4] sm:$0xf]
        %v304 = vld [vmem:[#allocation5 + $0x8] sm:$0xf]
        %v305 = vld [vmem:[#allocation5 + $0xc] sm:$0xf]
        %v306 = vld [vmem:[#allocation5 + $0x10] sm:$0xf]
        %v307 = vld [vmem:[#allocation5 + $0x14] sm:$0xf]
        %v308 = vld [vmem:[#allocation5 + $0x18] sm:$0xf]
        %v309 = vld [vmem:[#allocation5 + $0x1c] sm:$0xf]
        %v310 = vld [vmem:[#allocation5 + $0x20] sm:$0xf]
        %v311 = vld [vmem:[#allocation5 + $0x24] sm:$0xf]
        %v312 = vld [vmem:[#allocation5 + $0x28] sm:$0xf]
        %v313 = vld [vmem:[#allocation5 + $0x2c] sm:$0xf]
        %v314 = vld [vmem:[#allocation5 + $0x30] sm:$0xf]
        %v315 = vld [vmem:[#allocation5 + $0x34] sm:$0xf]
        %v316 = vld [vmem:[#allocation5 + $0x38] sm:$0xf]
        %v317 = vld [vmem:[#allocation5 + $0x3c] sm:$0xf]
        %v318 = vld [vmem:[#allocation7] sm:$0x1]
        %v320 = vlaneseq
        %v321 = vshrl.u32 %v320, 7
        %v322 = vsub.s32 0, %v321
        %v323 = vrot.slane %v318, %v322
        %v341 = vunpack.c.l.b16 %v302
        %v342 = vunpack.c.l.b16 %v303
        %v343 = vunpack.c.l.b16 %v304
        %v344 = vunpack.c.l.b16 %v305
        %v345 = vunpack.c.l.b16 %v306
        %v346 = vunpack.c.l.b16 %v307
        %v347 = vunpack.c.l.b16 %v308
        %v348 = vunpack.c.l.b16 %v309
        %v349 = vunpack.c.l.b16 %v310
        %v350 = vunpack.c.l.b16 %v311
        %v351 = vunpack.c.l.b16 %v312
        %v352 = vunpack.c.l.b16 %v313
        %v353 = vunpack.c.l.b16 %v314
        %v354 = vunpack.c.l.b16 %v315
        %v355 = vunpack.c.l.b16 %v316
        %v356 = vunpack.c.l.b16 %v317
        %v357 = vpack.c.b16 %v342, %v341
        %v358 = vpack.c.b16 %v344, %v343
        %v359 = vpack.c.b16 %v346, %v345
        %v360 = vpack.c.b16 %v348, %v347
        %v361 = vpack.c.b16 %v350, %v349
        %v362 = vpack.c.b16 %v352, %v351
        %v363 = vpack.c.b16 %v354, %v353
        %v364 = vpack.c.b16 %v356, %v355
        %373 = vmatprep.subr.bf16.mxu0 0
        %374 = vmatpush1.bf16.msra.mxu0 %v364
        %375 = vmatprep.subr.bf16.mxu0 0
        %376 = vmatpush1.bf16.msra.mxu0 %v363
        %377 = vmatprep.subr.bf16.mxu0 0
        %378 = vmatpush1.bf16.msra.mxu0 %v362
        %379 = vmatprep.subr.bf16.mxu0 0
        %380 = vmatpush1.bf16.msra.mxu0 %v361
        %381 = vmatprep.subr.bf16.mxu0 0
        %382 = vmatpush1.bf16.msra.mxu0 %v360
        %383 = vmatprep.subr.bf16.mxu0 0
        %384 = vmatpush1.bf16.msra.mxu0 %v359
        %385 = vmatprep.subr.bf16.mxu0 0
        %386 = vmatpush1.bf16.msra.mxu0 %v358
        %387 = vmatprep.subr.bf16.mxu0 0
        %388 = vmatpush1.bf16.msra.mxu0 %v357
        %389 = vmatprep.subr.bf16.mxu0 0
        %390 = vmatpush2.bf16.msra.mxu0 0
        %391 = vmatprep.subr.bf16.mxu0 0
        %392 = vmatpush2.bf16.msra.mxu0 0
        %393 = vmatprep.subr.bf16.mxu0 0
        %394 = vmatpush2.bf16.msra.mxu0 0
        %395 = vmatprep.subr.bf16.mxu0 0
        %396 = vmatpush2.bf16.msra.mxu0 0
        %397 = vmatprep.subr.bf16.mxu0 0
        %398 = vmatpush2.bf16.msra.mxu0 0
        %399 = vmatprep.subr.bf16.mxu0 0
        %400 = vmatpush2.bf16.msra.mxu0 0
        %401 = vmatprep.subr.bf16.mxu0 0
        %402 = vmatpush2.bf16.msra.mxu0 0
        %403 = vmatprep.subr.bf16.mxu0 0
        %404 = vmatpush2.bf16.msra.mxu0 0
        %405 = vmatprep.mubr.bf16.mxu0 0
        %406 = vmatmul.mubr.bf16.gmra.mxu0 %v301
        %v407 = vpop.f32.mrf.mxu0
        %v408 = vadd.f32 %v323, %v407
        %v409 = vpop.f32.mrf.mxu0
        %v410 = vpop.f32.mrf.mxu0
        %v411 = vpop.f32.mrf.mxu0
        %412 = vdwg.mxu0
        %v413 = vmax.f32 %v408, 0.0
        %v414 = vld [vmem:[%s269] sm:$0x1]
        %v416 = vlaneseq
        %v417 = vshrl.u32 %v416, 7
        %v418 = vsub.s32 0, %v417
        %v419 = vrot.slane %v414, %v418
        %v421 = vadd.f32 %v413, %v419
        %v422 = vpack.c.bf16 %v421, %v421
        %s423 = scalar_lea.vmem [#allocation5], 64
        %v424 = vld [vmem:[%s423] sm:$0xf]
        %v425 = vld [vmem:[%s423 + $0x4] sm:$0xf]
        %v426 = vld [vmem:[%s423 + $0x8] sm:$0xf]
        %v427 = vld [vmem:[%s423 + $0xc] sm:$0xf]
        %v428 = vld [vmem:[%s423 + $0x10] sm:$0xf]
        %v429 = vld [vmem:[%s423 + $0x14] sm:$0xf]
        %v430 = vld [vmem:[%s423 + $0x18] sm:$0xf]
        %v431 = vld [vmem:[%s423 + $0x1c] sm:$0xf]
        %v432 = vld [vmem:[%s423 + $0x20] sm:$0xf]
        %v433 = vld [vmem:[%s423 + $0x24] sm:$0xf]
        %v434 = vld [vmem:[%s423 + $0x28] sm:$0xf]
        %v435 = vld [vmem:[%s423 + $0x2c] sm:$0xf]
        %v436 = vld [vmem:[%s423 + $0x30] sm:$0xf]
        %v437 = vld [vmem:[%s423 + $0x34] sm:$0xf]
        %v438 = vld [vmem:[%s423 + $0x38] sm:$0xf]
        %v439 = vld [vmem:[%s423 + $0x3c] sm:$0xf]
        %s440 = scalar_lea.vmem [#allocation7], 1
        %v441 = vld [vmem:[%s440] sm:$0x1]
        %v443 = vlaneseq
        %v444 = vshrl.u32 %v443, 7
        %v445 = vsub.s32 0, %v444
        %v446 = vrot.slane %v441, %v445
        %v464 = vunpack.c.l.b16 %v424
        %v465 = vunpack.c.l.b16 %v425
        %v466 = vunpack.c.l.b16 %v426
        %v467 = vunpack.c.l.b16 %v427
        %v468 = vunpack.c.l.b16 %v428
        %v469 = vunpack.c.l.b16 %v429
        %v470 = vunpack.c.l.b16 %v430
        %v471 = vunpack.c.l.b16 %v431
        %v472 = vunpack.c.l.b16 %v432
        %v473 = vunpack.c.l.b16 %v433
        %v474 = vunpack.c.l.b16 %v434
        %v475 = vunpack.c.l.b16 %v435
        %v476 = vunpack.c.l.b16 %v436
        %v477 = vunpack.c.l.b16 %v437
        %v478 = vunpack.c.l.b16 %v438
        %v479 = vunpack.c.l.b16 %v439
        %v480 = vpack.c.b16 %v465, %v464
        %v481 = vpack.c.b16 %v467, %v466
        %v482 = vpack.c.b16 %v469, %v468
        %v483 = vpack.c.b16 %v471, %v470
        %v484 = vpack.c.b16 %v473, %v472
        %v485 = vpack.c.b16 %v475, %v474
        %v486 = vpack.c.b16 %v477, %v476
        %v487 = vpack.c.b16 %v479, %v478
        %496 = vmatprep.subr.bf16.mxu0 0
        %497 = vmatpush1.bf16.msra.mxu0 %v487
        %498 = vmatprep.subr.bf16.mxu0 0
        %499 = vmatpush1.bf16.msra.mxu0 %v486
        %500 = vmatprep.subr.bf16.mxu0 0
        %501 = vmatpush1.bf16.msra.mxu0 %v485
        %502 = vmatprep.subr.bf16.mxu0 0
        %503 = vmatpush1.bf16.msra.mxu0 %v484
        %504 = vmatprep.subr.bf16.mxu0 0
        %505 = vmatpush1.bf16.msra.mxu0 %v483
        %506 = vmatprep.subr.bf16.mxu0 0
        %507 = vmatpush1.bf16.msra.mxu0 %v482
        %508 = vmatprep.subr.bf16.mxu0 0
        %509 = vmatpush1.bf16.msra.mxu0 %v481
        %510 = vmatprep.subr.bf16.mxu0 0
        %511 = vmatpush1.bf16.msra.mxu0 %v480
        %512 = vmatprep.subr.bf16.mxu0 0
        %513 = vmatpush2.bf16.msra.mxu0 0
        %514 = vmatprep.subr.bf16.mxu0 0
        %515 = vmatpush2.bf16.msra.mxu0 0
        %516 = vmatprep.subr.bf16.mxu0 0
        %517 = vmatpush2.bf16.msra.mxu0 0
        %518 = vmatprep.subr.bf16.mxu0 0
        %519 = vmatpush2.bf16.msra.mxu0 0
        %520 = vmatprep.subr.bf16.mxu0 0
        %521 = vmatpush2.bf16.msra.mxu0 0
        %522 = vmatprep.subr.bf16.mxu0 0
        %523 = vmatpush2.bf16.msra.mxu0 0
        %524 = vmatprep.subr.bf16.mxu0 0
        %525 = vmatpush2.bf16.msra.mxu0 0
        %526 = vmatprep.subr.bf16.mxu0 0
        %527 = vmatpush2.bf16.msra.mxu0 0
        %528 = vmatprep.mubr.bf16.mxu0 0
        %529 = vmatmul.mubr.bf16.gmra.mxu0 %v422
        %v530 = vpop.f32.mrf.mxu0
        %v531 = vadd.f32 %v446, %v530
        %v532 = vpop.f32.mrf.mxu0
        %v533 = vpop.f32.mrf.mxu0
        %v534 = vpop.f32.mrf.mxu0
        %535 = vdwg.mxu0
        %v536 = vmax.f32 %v531, 0.0
        %s537 = scalar_lea.vmem %s269, 1 [#allocation8]
        %v538 = vld [vmem:[%s537] sm:$0x1]
        %v540 = vlaneseq
        %v541 = vshrl.u32 %v540, 7
        %v542 = vsub.s32 0, %v541
        %v543 = vrot.slane %v538, %v542
        %v545 = vadd.f32 %v536, %v543
        %v546 = vpack.c.bf16 %v545, %v545
        %s547 = scalar_lea.vmem [#allocation5], 128
        %v548 = vld [vmem:[%s547] sm:$0xf]
        %v549 = vld [vmem:[%s547 + $0x4] sm:$0xf]
        %v550 = vld [vmem:[%s547 + $0x8] sm:$0xf]
        %v551 = vld [vmem:[%s547 + $0xc] sm:$0xf]
        %v552 = vld [vmem:[%s547 + $0x10] sm:$0xf]
        %v553 = vld [vmem:[%s547 + $0x14] sm:$0xf]
        %v554 = vld [vmem:[%s547 + $0x18] sm:$0xf]
        %v555 = vld [vmem:[%s547 + $0x1c] sm:$0xf]
        %v556 = vld [vmem:[%s547 + $0x20] sm:$0xf]
        %v557 = vld [vmem:[%s547 + $0x24] sm:$0xf]
        %v558 = vld [vmem:[%s547 + $0x28] sm:$0xf]
        %v559 = vld [vmem:[%s547 + $0x2c] sm:$0xf]
        %v560 = vld [vmem:[%s547 + $0x30] sm:$0xf]
        %v561 = vld [vmem:[%s547 + $0x34] sm:$0xf]
        %v562 = vld [vmem:[%s547 + $0x38] sm:$0xf]
        %v563 = vld [vmem:[%s547 + $0x3c] sm:$0xf]
        %s564 = scalar_lea.vmem [#allocation7], 2
        %v565 = vld [vmem:[%s564] sm:$0x1]
        %v567 = vlaneseq
        %v568 = vshrl.u32 %v567, 7
        %v569 = vsub.s32 0, %v568
        %v570 = vrot.slane %v565, %v569
        %v588 = vunpack.c.l.b16 %v548
        %v589 = vunpack.c.l.b16 %v549
        %v590 = vunpack.c.l.b16 %v550
        %v591 = vunpack.c.l.b16 %v551
        %v592 = vunpack.c.l.b16 %v552
        %v593 = vunpack.c.l.b16 %v553
        %v594 = vunpack.c.l.b16 %v554
        %v595 = vunpack.c.l.b16 %v555
        %v596 = vunpack.c.l.b16 %v556
        %v597 = vunpack.c.l.b16 %v557
        %v598 = vunpack.c.l.b16 %v558
        %v599 = vunpack.c.l.b16 %v559
        %v600 = vunpack.c.l.b16 %v560
        %v601 = vunpack.c.l.b16 %v561
        %v602 = vunpack.c.l.b16 %v562
        %v603 = vunpack.c.l.b16 %v563
        %v604 = vpack.c.b16 %v589, %v588
        %v605 = vpack.c.b16 %v591, %v590
        %v606 = vpack.c.b16 %v593, %v592
        %v607 = vpack.c.b16 %v595, %v594
        %v608 = vpack.c.b16 %v597, %v596
        %v609 = vpack.c.b16 %v599, %v598
        %v610 = vpack.c.b16 %v601, %v600
        %v611 = vpack.c.b16 %v603, %v602
        %620 = vmatprep.subr.bf16.mxu0 0
        %621 = vmatpush1.bf16.msra.mxu0 %v611
        %622 = vmatprep.subr.bf16.mxu0 0
        %623 = vmatpush1.bf16.msra.mxu0 %v610
        %624 = vmatprep.subr.bf16.mxu0 0
        %625 = vmatpush1.bf16.msra.mxu0 %v609
        %626 = vmatprep.subr.bf16.mxu0 0
        %627 = vmatpush1.bf16.msra.mxu0 %v608
        %628 = vmatprep.subr.bf16.mxu0 0
        %629 = vmatpush1.bf16.msra.mxu0 %v607
        %630 = vmatprep.subr.bf16.mxu0 0
        %631 = vmatpush1.bf16.msra.mxu0 %v606
        %632 = vmatprep.subr.bf16.mxu0 0
        %633 = vmatpush1.bf16.msra.mxu0 %v605
        %634 = vmatprep.subr.bf16.mxu0 0
        %635 = vmatpush1.bf16.msra.mxu0 %v604
        %636 = vmatprep.subr.bf16.mxu0 0
        %637 = vmatpush2.bf16.msra.mxu0 0
        %638 = vmatprep.subr.bf16.mxu0 0
        %639 = vmatpush2.bf16.msra.mxu0 0
        %640 = vmatprep.subr.bf16.mxu0 0
        %641 = vmatpush2.bf16.msra.mxu0 0
        %642 = vmatprep.subr.bf16.mxu0 0
        %643 = vmatpush2.bf16.msra.mxu0 0
        %644 = vmatprep.subr.bf16.mxu0 0
        %645 = vmatpush2.bf16.msra.mxu0 0
        %646 = vmatprep.subr.bf16.mxu0 0
        %647 = vmatpush2.bf16.msra.mxu0 0
        %648 = vmatprep.subr.bf16.mxu0 0
        %649 = vmatpush2.bf16.msra.mxu0 0
        %650 = vmatprep.subr.bf16.mxu0 0
        %651 = vmatpush2.bf16.msra.mxu0 0
        %652 = vmatprep.mubr.bf16.mxu0 0
        %653 = vmatmul.mubr.bf16.gmra.mxu0 %v546
        %v654 = vpop.f32.mrf.mxu0
        %v655 = vadd.f32 %v570, %v654
        %v656 = vpop.f32.mrf.mxu0
        %v657 = vpop.f32.mrf.mxu0
        %v658 = vpop.f32.mrf.mxu0
        %659 = vdwg.mxu0
        %v660 = vmax.f32 %v655, 0.0
        %s661 = scalar_lea.vmem %s269, 2 [#allocation8]
        %v662 = vld [vmem:[%s661] sm:$0x1]
        %v664 = vlaneseq
        %v665 = vshrl.u32 %v664, 7
        %v666 = vsub.s32 0, %v665
        %v667 = vrot.slane %v662, %v666
        %v669 = vadd.f32 %v660, %v667
        %v670 = vpack.c.bf16 %v669, %v669
        %s671 = scalar_lea.vmem [#allocation5], 192
        %v672 = vld [vmem:[%s671] sm:$0xf]
        %v673 = vld [vmem:[%s671 + $0x4] sm:$0xf]
        %v674 = vld [vmem:[%s671 + $0x8] sm:$0xf]
        %v675 = vld [vmem:[%s671 + $0xc] sm:$0xf]
        %v676 = vld [vmem:[%s671 + $0x10] sm:$0xf]
        %v677 = vld [vmem:[%s671 + $0x14] sm:$0xf]
        %v678 = vld [vmem:[%s671 + $0x18] sm:$0xf]
        %v679 = vld [vmem:[%s671 + $0x1c] sm:$0xf]
        %v680 = vld [vmem:[%s671 + $0x20] sm:$0xf]
        %v681 = vld [vmem:[%s671 + $0x24] sm:$0xf]
        %v682 = vld [vmem:[%s671 + $0x28] sm:$0xf]
        %v683 = vld [vmem:[%s671 + $0x2c] sm:$0xf]
        %v684 = vld [vmem:[%s671 + $0x30] sm:$0xf]
        %v685 = vld [vmem:[%s671 + $0x34] sm:$0xf]
        %v686 = vld [vmem:[%s671 + $0x38] sm:$0xf]
        %v687 = vld [vmem:[%s671 + $0x3c] sm:$0xf]
        %s688 = scalar_lea.vmem [#allocation7], 3
        %v689 = vld [vmem:[%s688] sm:$0x1]
        %v691 = vlaneseq
        %v692 = vshrl.u32 %v691, 7
        %v693 = vsub.s32 0, %v692
        %v694 = vrot.slane %v689, %v693
        %v712 = vunpack.c.l.b16 %v672
        %v713 = vunpack.c.l.b16 %v673
        %v714 = vunpack.c.l.b16 %v674
        %v715 = vunpack.c.l.b16 %v675
        %v716 = vunpack.c.l.b16 %v676
        %v717 = vunpack.c.l.b16 %v677
        %v718 = vunpack.c.l.b16 %v678
        %v719 = vunpack.c.l.b16 %v679
        %v720 = vunpack.c.l.b16 %v680
        %v721 = vunpack.c.l.b16 %v681
        %v722 = vunpack.c.l.b16 %v682
        %v723 = vunpack.c.l.b16 %v683
        %v724 = vunpack.c.l.b16 %v684
        %v725 = vunpack.c.l.b16 %v685
        %v726 = vunpack.c.l.b16 %v686
        %v727 = vunpack.c.l.b16 %v687
        %v728 = vpack.c.b16 %v713, %v712
        %v729 = vpack.c.b16 %v715, %v714
        %v730 = vpack.c.b16 %v717, %v716
        %v731 = vpack.c.b16 %v719, %v718
        %v732 = vpack.c.b16 %v721, %v720
        %v733 = vpack.c.b16 %v723, %v722
        %v734 = vpack.c.b16 %v725, %v724
        %v735 = vpack.c.b16 %v727, %v726
        %744 = vmatprep.subr.bf16.mxu0 0
        %745 = vmatpush1.bf16.msra.mxu0 %v735
        %746 = vmatprep.subr.bf16.mxu0 0
        %747 = vmatpush1.bf16.msra.mxu0 %v734
        %748 = vmatprep.subr.bf16.mxu0 0
        %749 = vmatpush1.bf16.msra.mxu0 %v733
        %750 = vmatprep.subr.bf16.mxu0 0
        %751 = vmatpush1.bf16.msra.mxu0 %v732
        %752 = vmatprep.subr.bf16.mxu0 0
        %753 = vmatpush1.bf16.msra.mxu0 %v731
        %754 = vmatprep.subr.bf16.mxu0 0
        %755 = vmatpush1.bf16.msra.mxu0 %v730
        %756 = vmatprep.subr.bf16.mxu0 0
        %757 = vmatpush1.bf16.msra.mxu0 %v729
        %758 = vmatprep.subr.bf16.mxu0 0
        %759 = vmatpush1.bf16.msra.mxu0 %v728
        %760 = vmatprep.subr.bf16.mxu0 0
        %761 = vmatpush2.bf16.msra.mxu0 0
        %762 = vmatprep.subr.bf16.mxu0 0
        %763 = vmatpush2.bf16.msra.mxu0 0
        %764 = vmatprep.subr.bf16.mxu0 0
        %765 = vmatpush2.bf16.msra.mxu0 0
        %766 = vmatprep.subr.bf16.mxu0 0
        %767 = vmatpush2.bf16.msra.mxu0 0
        %768 = vmatprep.subr.bf16.mxu0 0
        %769 = vmatpush2.bf16.msra.mxu0 0
        %770 = vmatprep.subr.bf16.mxu0 0
        %771 = vmatpush2.bf16.msra.mxu0 0
        %772 = vmatprep.subr.bf16.mxu0 0
        %773 = vmatpush2.bf16.msra.mxu0 0
        %774 = vmatprep.subr.bf16.mxu0 0
        %775 = vmatpush2.bf16.msra.mxu0 0
        %776 = vmatprep.mubr.bf16.mxu0 0
        %777 = vmatmul.mubr.bf16.gmra.mxu0 %v670
        %v778 = vpop.f32.mrf.mxu0
        %v779 = vadd.f32 %v694, %v778
        %v780 = vpop.f32.mrf.mxu0
        %v781 = vpop.f32.mrf.mxu0
        %v782 = vpop.f32.mrf.mxu0
        %783 = vdwg.mxu0
        %v784 = vmax.f32 %v779, 0.0
        %s785 = scalar_lea.vmem %s269, 3 [#allocation8]
        %v786 = vld [vmem:[%s785] sm:$0x1]
        %v788 = vlaneseq
        %v789 = vshrl.u32 %v788, 7
        %v790 = vsub.s32 0, %v789
        %v791 = vrot.slane %v786, %v790
        %v793 = vadd.f32 %v784, %v791
        %794 = vst [vmem:[%s298] sm:$0xff] %v793
        %s795 = sand.u32 %s143, 1
        %s796 = scalar_lea.sflag [#allocation4], %s795
        %s797 = sand.u32 %s143, 1
        %s798 = smul.addr %s797, 8
        %s799 = scalar_lea.vmem [#allocation10], %s798
        // Predicated region
        $region53: #{tpu_custom_call.1} parent=35 // pred_check
          %p800 = pneg %p153
        $region54: #{tpu_custom_call.1} parent=35 // pred_check_branch
          %802 = sbr.rel (%p800) target = $region56
        $region55: #{tpu_custom_call.1} parent=35 // pred_region
          %s804 = ssub.s32 128, 128
          %805 = vsyncadd %s796, %s804
          %s806 = sadd.s32 %s30, %s29
          %s807 = smul.addr %s806, 128
          %s808 = scalar_lea.hbm %s4, %s807
          %s810 = sshll.u32 %s799, 4
          %s811 = int_to_ptr.vmem [resolvable:$true] %s810
          %813 = dma.vmem_to_hbm [thread:$0]  %s811, 128, %s808, %s796
        $region56: #{tpu_custom_call.1} parent=35 // pred_fallthru
          _
      $region36: #{tpu_custom_call.1} parent=5 // pred_fallthru
        _
      %p814 = scmp.le.s32.totalorder 2, %s20
      // Predicated region
      $region57: #{tpu_custom_call.1} parent=5 // pred_check
        %p815 = pneg %p814
      $region58: #{tpu_custom_call.1} parent=5 // pred_check_branch
        %817 = sbr.rel (%p815) target = $region60
      $region59: #{tpu_custom_call.1} parent=5 // pred_region
        %s818 = ssub.s32 %s20, 2
        // Predicated region
        $region61: #{tpu_custom_call.1} parent=59 // pred_check
          %p819 = pneg %p159
        $region62: #{tpu_custom_call.1} parent=59 // pred_check_branch
          %821 = sbr.rel (%p819) target = $region64
        $region63: #{tpu_custom_call.1} parent=59 // pred_region
          %s822 = sand.u32 %s144, 1
          %s823 = scalar_lea.sflag [#allocation4], %s822
          %s824 = sand.u32 %s144, 1
          %s825 = smul.addr %s824, 8
          %s826 = scalar_lea.vmem [#allocation10], %s825
          %827 = dma.done %s823, 128
        $region64: #{tpu_custom_call.1} parent=59 // pred_fallthru
          _
      $region60: #{tpu_custom_call.1} parent=5 // pred_fallthru
        _
    $region6: #{tpu_custom_call.1} parent=1 // loop_footer
      %s24 = sadd.s32 1, %s20
    $region7: #{tpu_custom_call.1} parent=1 // loop_footer_branch
      %19 = sbr.rel target = $region3
    $region8: #{tpu_custom_call.1} parent=1 // loop_exit
      _
    %828 = vsyncpa [#allocation3], 1
    %s829 = scalar_lea.sflag [#allocation3], 1
    %830 = vsyncpa %s829, 1
    %831 = vsyncpa [#allocation6], 1
    %832 = vsyncpa [#allocation9], 1
    %s833 = scalar_lea.sflag [#allocation9], 1
    %834 = vsyncpa %s833, 1
    %835 = vsyncpa [#allocation4], 1
    %s836 = scalar_lea.sflag [#allocation4], 1
    %837 = vsyncpa %s836, 1

</llo_original>
